<compile_context>
chip_gen: v7x
topology: tpu7x:2x2x1
jax: 0.10.0
libtpu: 0.0.40
codegen_flags: <defaults>
</compile_context>

<pallas_src>
import functools

import jax
import jax.numpy as jnp
from jax.experimental import pallas as pl
from jax.experimental.pallas import tpu as pltpu

V_THRESHOLD = 1.0
V_RESET = 0.0

MAX_TILE_ROWS = 2048            # up to 2048 x 512 f32 = 4 MiB per buffer
SMALL_FASTPATH_BYTES = 1 << 20  # <= 1 MiB: let XLA fuse the 3-op expression
VMEM_LIMIT_BYTES = 48 << 20     # covers double-buffered tiles on v5e/v6e/v7x


def _spiking_kernel(v_ref, spike_ref, v_out_ref):
    v = v_ref[...]
    spike_pre = v - jnp.asarray(V_THRESHOLD, dtype=v.dtype)
    fired = spike_pre > 0
    # surrogate relu forward: (spike_pre > 0) as numbers (exactly 0/1)
    spike_ref[...] = fired.astype(spike_ref.dtype)
    # v.masked_fill_(spike_pre > 0, v_reset)
    v_out_ref[...] = jnp.where(fired, jnp.asarray(V_RESET, dtype=v.dtype), v)


def _spiking_jnp(v, spike_dtype):
    spike_pre = v - jnp.asarray(V_THRESHOLD, dtype=v.dtype)
    fired = spike_pre > 0
    spike = fired.astype(spike_dtype)
    v_new = jnp.where(fired, jnp.asarray(V_RESET, dtype=v.dtype), v)
    return spike, v_new


def _round_up(x, m):
    return ((x + m - 1) // m) * m


def _pick_lanes(total):
    """Largest lane width in {512,256,128} dividing `total`, else None (ragged)."""
    for lanes in (512, 256, 128):
        if total % lanes == 0:
            return lanes
    return None


@functools.partial(jax.jit, static_argnames=("spike_dtype", "force_pallas"))
def base_node_spiking(v, *, spike_dtype=jnp.bfloat16, force_pallas=False):
    """Runs BaseNode.spiking() on a membrane-potential tensor.

    Args:
      v: membrane potential, any shape / float dtype (dtype is preserved).
      spike_dtype: dtype of the spike output (values are exactly 0/1; bf16
        default halves spike writeback vs. the torch float32 convention).
      force_pallas: skip the small-tensor jnp fast path (for testing).
    Returns:
      (spike, v_new): spike in `spike_dtype`, v_new in v.dtype, same shape as v.
    """
    orig_shape = v.shape
    dtype = v.dtype
    total = int(v.size)
    itemsize = jnp.dtype(dtype).itemsize

    # Small-tensor fast path: a fused XLA elementwise beats a pallas_call launch.
    if total == 0 or (not force_pallas and total * itemsize <= SMALL_FASTPATH_BYTES):
        return _spiking_jnp(v, spike_dtype)

    # Flatten to a lane-dense 2D slab [rows, lanes]. In the common case `lanes`
    # divides `total` and the reshapes are metadata-only (no HBM traffic).
    lanes = _pick_lanes(total)
    ragged = lanes is None
    v_flat = v.reshape(-1)
    if ragged:
        lanes = 128
        padded = _round_up(total, lanes)
        # zero padding never fires (0 <= threshold) and is sliced off below
        v_flat = jnp.pad(v_flat, (0, padded - total))
    else:
        padded = total
    rows = padded // lanes
    v2d = v_flat.reshape(rows, lanes)

    # Sublane granularity from the narrowest dtype touched (f32->8, bf16->16, i8->32).
    min_itemsize = min(itemsize, jnp.dtype(spike_dtype).itemsize)
    sub = 32 // min_itemsize
    if rows <= sub:
        tile_rows = rows  # single block equal to the full array extent
    else:
        # Aim for >= 2 grid steps (v7x megacore shards the parallel axis across
        # both TensorCores) while capping the per-buffer VMEM footprint.
        tile_rows = min(MAX_TILE_ROWS, _round_up(pl.cdiv(rows, 2), sub))
    grid = (pl.cdiv(rows, tile_rows),)

    spike2d, v_new2d = pl.pallas_call(
        _spiking_kernel,
        out_shape=(
            jax.ShapeDtypeStruct((rows, lanes), spike_dtype),
            jax.ShapeDtypeStruct((rows, lanes), dtype),
        ),
        grid=grid,
        in_specs=[pl.BlockSpec((tile_rows, lanes), lambda i: (i, 0))],
        out_specs=(
            pl.BlockSpec((tile_rows, lanes), lambda i: (i, 0)),
            pl.BlockSpec((tile_rows, lanes), lambda i: (i, 0)),
        ),
        # v_new written in place over v (matches torch's in-place masked_fill_)
        input_output_aliases={0: 1},
        compiler_params=pltpu.CompilerParams(
            dimension_semantics=("parallel",),
            vmem_limit_bytes=VMEM_LIMIT_BYTES,
        ),
    )(v2d)

    if ragged:
        spike = spike2d.reshape(-1)[:total].reshape(orig_shape)
        v_new = v_new2d.reshape(-1)[:total].reshape(orig_shape)
    else:
        spike = spike2d.reshape(orig_shape)
        v_new = v_new2d.reshape(orig_shape)
    return spike, v_new


def base_node_spiking_ref(v):
    """Pure-JAX reference mirroring the torch semantics (float32 math)."""
    vf = v.astype(jnp.float32)
    spike_pre = vf - V_THRESHOLD
    fired = spike_pre > 0.0
    spike = fired.astype(jnp.float32)
    v_new = jnp.where(fired, jnp.float32(V_RESET), vf)
    return spike, v_new


def _check(x, spike, v_new):
    spike_ref, v_new_ref = base_node_spiking_ref(x)
    assert spike.shape == x.shape and v_new.shape == x.shape
    assert jnp.array_equal(spike.astype(jnp.float32), spike_ref)
    assert jnp.array_equal(v_new.astype(jnp.float32), v_new_ref.astype(x.dtype).astype(jnp.float32))


if __name__ == "__main__":
    # BaseNode has no learned parameters (v_threshold / v_reset are plain
    # floats set in __init__), so nothing else to initialize.
    key = jax.random.PRNGKey(0)

    # 1) CIFAR-scale small NCHW tensor, forced through the Pallas path
    #    (single-block grid), checked bit-exactly against the reference.
    x_small = jax.random.normal(key, (2, 4, 16, 16), dtype=jnp.float32) * 2.0
    spike, v_new = base_node_spiking(x_small, force_pallas=True)
    spike, v_new = jax.block_until_ready((spike, v_new))
    _check(x_small, spike, v_new)

    # 2) Same tensor through the default dispatch (small-tensor jnp fast path).
    spike_fp, v_new_fp = jax.block_until_ready(base_node_spiking(x_small))
    _check(x_small, spike_fp, v_new_fp)

    # 3) A modest activation-sized tensor that exercises the multi-step
    #    (pipelined, megacore-shardable) grid: rows=512 -> tile_rows=256, grid=(2,).
    key2 = jax.random.PRNGKey(0)
    x_med = jax.random.normal(key2, (4, 64, 32, 32), dtype=jnp.float32) * 2.0
    spike_m, v_new_m = jax.block_until_ready(
        base_node_spiking(x_med, force_pallas=True))
    _check(x_med, spike_m, v_new_m)

    print("KERNEL_OK")
</pallas_src>

<mosaic_0001>
module attributes {stable_mosaic.version = 11 : i64} {
  func.func @_spiking_kernel(%arg0: i32, %arg1: memref<4x512xf32, #tpu.memory_space<vmem>>, %arg2: memref<4x512xbf16, #tpu.memory_space<vmem>>, %arg3: memref<4x512xf32, #tpu.memory_space<vmem>>) attributes {dimension_semantics = [#tpu.dimension_semantics<parallel>], iteration_bounds = array<i64: 1>, scalar_prefetch = 0 : i64, scratch_operands = 0 : i64, tpu.core_type = #tpu.core_type<tc>, window_params = [{transform_indices = @transform_0, window_bounds = array<i64: 4, 512>}, {transform_indices = @transform_1, window_bounds = array<i64: 4, 512>}, {transform_indices = @transform_2, window_bounds = array<i64: 4, 512>}]} {
    %c0 = arith.constant 0 : index
    %c0_0 = arith.constant 0 : index
    %0 = vector.load %arg1[%c0, %c0_0] : memref<4x512xf32, #tpu.memory_space<vmem>>, vector<4x512xf32>
    %cst = arith.constant 1.000000e+00 : f32
    %1 = vector.broadcast %cst : f32 to vector<4x512xf32>
    %2 = arith.subf %0, %1 : vector<4x512xf32>
    %cst_1 = arith.constant 0.000000e+00 : f32
    %3 = vector.broadcast %cst_1 : f32 to vector<4x512xf32>
    %4 = arith.cmpf ogt, %2, %3 : vector<4x512xf32>
    %5 = arith.extui %4 : vector<4x512xi1> to vector<4x512xi32>
    %6 = arith.sitofp %5 : vector<4x512xi32> to vector<4x512xf32>
    %7 = arith.truncf %6 : vector<4x512xf32> to vector<4x512xbf16>
    %c0_2 = arith.constant 0 : index
    %c0_3 = arith.constant 0 : index
    %8 = vector.load %arg2[%c0_2, %c0_3] : memref<4x512xbf16, #tpu.memory_space<vmem>>, vector<4x512xbf16>
    tpu.vector_store %arg2[%c0_2, %c0_3], %7 {strides = array<i32>} : memref<4x512xbf16, #tpu.memory_space<vmem>>, vector<4x512xbf16>,
    %cst_4 = arith.constant 0.000000e+00 : f32
    %9 = vector.broadcast %cst_4 : f32 to vector<4x512xf32>
    %10 = arith.select %4, %9, %0 : vector<4x512xi1>, vector<4x512xf32>
    %c0_5 = arith.constant 0 : index
    %c0_6 = arith.constant 0 : index
    %11 = vector.load %arg3[%c0_5, %c0_6] : memref<4x512xf32, #tpu.memory_space<vmem>>, vector<4x512xf32>
    tpu.vector_store %arg3[%c0_5, %c0_6], %10 {strides = array<i32>} : memref<4x512xf32, #tpu.memory_space<vmem>>, vector<4x512xf32>,
    return
  }
  func.func @transform_0(%arg0: i32) -> (i32, i32) {
    %c0_i32 = arith.constant 0 : i32
    %c0_i32_0 = arith.constant 0 : i32
    return %arg0, %c0_i32 : i32, i32
  }
  func.func @transform_1(%arg0: i32) -> (i32, i32) {
    %c0_i32 = arith.constant 0 : i32
    %c0_i32_0 = arith.constant 0 : i32
    return %arg0, %c0_i32 : i32, i32
  }
  func.func @transform_2(%arg0: i32) -> (i32, i32) {
    %c0_i32 = arith.constant 0 : i32
    %c0_i32_0 = arith.constant 0 : i32
    return %arg0, %c0_i32 : i32, i32
  }
}

</mosaic_0001>

<llo_original>
// kernel: base_node_spiking.1
$region0: #{base_node_spiking.1}
  #allocation0 [shape = 'u32[]', space=smem, size = 0x4, offset = 0x4, fixed_abs, tag = 'smem constant byte address 0x4 - core index']
  #allocation1 [shape = 'u32[144,128]{1,0:T(1,128)}', space=vmem, size = 0x12000, scoped, tag = 'internal scratch']
  %s0 = inlined_call_operand.vmem [shape: f32[4,512], index: 0, kind: input, shape index: {}, may-alias: {0,2}]
  %s1 = inlined_call_operand.vmem [shape: bf16[4,512], index: 1, kind: output, shape index: {0}]
  %s2 = inlined_call_operand.vmem [shape: f32[4,512], index: 2, kind: output, shape index: {1}, may-alias: {0,2}]
  %3 = xla_tuple %s1, %s2
  %s4 = sld [smem:[#allocation0]]
  $region22: #{base_node_spiking.1} parent=0
    _
  %s6 = ssub.s32 1, %s4
  %s7 = scalar_select 0, %s6, %s4
  // Predicated region
  $region2: #{base_node_spiking.1} parent=0 // pred_check
    _
  $region3: #{base_node_spiking.1} parent=0 // pred_check_branch
    %9 = sbr.rel (0) target = $region5
  $region4: #{base_node_spiking.1} parent=0 // pred_region
    _
  $region5: #{base_node_spiking.1} parent=0 // pred_fallthru
    _
  %v10 = vld [vmem:[%s0] sm:$0xff]
  %v11 = vld [vmem:[%s0 + $0x8] sm:$0xff]
  %v12 = vsub.f32 %v10, 1.0
  %v13 = vsub.f32 %v11, 1.0
  %vm14 = vcmp.gt.f32.partialorder %v12, 0.0
  %vm15 = vcmp.gt.f32.partialorder %v13, 0.0
  %v16 = vsel %vm14, 1, 0
  %v17 = vsel %vm15, 1, 0
  %v18 = vcvt.s32.f32 %v16
  %v19 = vcvt.s32.f32 %v17
  %v22 = vcombine.high %v18, %v18
  %v23 = vcombine.high %v19, %v19
  %v26 = vpack.c.bf16 %v18, %v18
  %v27 = vpack.c.bf16 %v22, %v22
  %v28 = vpack.c.bf16 %v19, %v19
  %v29 = vpack.c.bf16 %v23, %v23
  %v34 = vcombine.low %v26, %v27
  %v35 = vcombine.low %v28, %v29
  %v37 = vunpack.c.l.s4 1983009808
  %v38 = vunpack.c.0.s8 %v37
  %v39 = vlaneseq
  %v40 = vshrl.u32 %v39, 7
  %v41 = vsub.s32 %v38, %v40
  %v42 = vrot.slane %v34, %v41
  %v44 = vunpack.c.l.s4 1983009808
  %v45 = vunpack.c.0.s8 %v44
  %v46 = vlaneseq
  %v47 = vshrl.u32 %v46, 7
  %v48 = vsub.s32 %v45, %v47
  %v49 = vrot.slane %v35, %v48
  %v50 = vcombine.low %v42, %v49
  %52 = vst [vmem:[%s1] sm:$0xff] %v50
  %v53 = vsel %vm14, 0.0, %v10
  %v54 = vsel %vm15, 0.0, %v11
  %55 = vst [vmem:[%s2] sm:$0xff] %v53
  %56 = vst [vmem:[%s2 + $0x8] sm:$0xff] %v54
  // Predicated region
  $region6: #{base_node_spiking.1} parent=0 // pred_check
    _
  $region7: #{base_node_spiking.1} parent=0 // pred_check_branch
    %58 = sbr.rel (0) target = $region9
  $region8: #{base_node_spiking.1} parent=0 // pred_region
    _
  $region9: #{base_node_spiking.1} parent=0 // pred_fallthru
    _
  // Predicated region
  $region10: #{base_node_spiking.1} parent=0 // pred_check
    _
  $region11: #{base_node_spiking.1} parent=0 // pred_check_branch
    %60 = sbr.rel (0) target = $region13
  $region12: #{base_node_spiking.1} parent=0 // pred_region
    _
  $region13: #{base_node_spiking.1} parent=0 // pred_fallthru
    _
  // Predicated region
  $region14: #{base_node_spiking.1} parent=0 // pred_check
    _
  $region15: #{base_node_spiking.1} parent=0 // pred_check_branch
    %62 = sbr.rel (0) target = $region17
  $region16: #{base_node_spiking.1} parent=0 // pred_region
    _
  $region17: #{base_node_spiking.1} parent=0 // pred_fallthru
    _
  // Predicated region
  $region18: #{base_node_spiking.1} parent=0 // pred_check
    _
  $region19: #{base_node_spiking.1} parent=0 // pred_check_branch
    %64 = sbr.rel (0) target = $region21
  $region20: #{base_node_spiking.1} parent=0 // pred_region
    _
  $region21: #{base_node_spiking.1} parent=0 // pred_fallthru
    _

</llo_original>
